<compile_context>
chip_gen: v6e
topology: v6e:2x2x1
jax: 0.10.0
libtpu: 0.0.40
codegen_flags: <defaults>
</compile_context>

<pallas_src>
import functools

import jax
import jax.numpy as jnp
from jax.experimental import pallas as pl
from jax.experimental.pallas import tpu as pltpu

BN_EPS = 1e-5
LANE = 128


def danet_kernel(x_ref, wf_ref, bf_ref, w0_ref, b0_ref, wl_ref, bl_ref,
                 out_ref, *, f_dim, h_dim, nc_dim):
    # ---- stand-in feature extractor: one K = C*HW MXU contraction ----------
    x = x_ref[...]                                                    # [TB, C*HW]
    feat = jnp.dot(x, wf_ref[...],
                   preferred_element_type=jnp.float32) + bf_ref[...]  # [TB, F] f32

    # ---- FC['0']: dropout(id) -> Linear(+folded BN) -> ReLU -----------------
    h = jnp.dot(feat.astype(w0_ref.dtype), w0_ref[...],
                preferred_element_type=jnp.float32) + b0_ref[...]     # [TB, H0]
    h = jnp.maximum(h, 0.0)

    # ---- FC['logits']: dropout(id) -> Linear --------------------------------
    logits = jnp.dot(h.astype(wl_ref.dtype), wl_ref[...],
                     preferred_element_type=jnp.float32) + bl_ref[...]  # [TB, NC]

    # ---- softmax over classes (f32 epilogue) --------------------------------
    m = jnp.max(logits, axis=-1, keepdims=True)
    e = jnp.exp(logits - m)
    denom = jnp.sum(e, axis=-1, keepdims=True)
    probs = e * pl.reciprocal(denom, approx=True)

    # ---- lane-dense output slab: [feat | h0 | logits | probs | zero pad] ----
    used = f_dim + h_dim + 2 * nc_dim
    pieces = [feat, h, logits, probs]
    pad_w = out_ref.shape[-1] - used
    if pad_w > 0:
        pieces.append(jnp.zeros((x.shape[0], pad_w), jnp.float32))
    out_ref[...] = jnp.concatenate(pieces, axis=-1)   # single unmasked store


def danet_forward(x, params, bn_domain=0, mxu_dtype=jnp.float32):
    """x: [B, C, H, W] float32.  Returns dict {'feat','0','logits','probs'}."""
    B, C, H, W = x.shape
    HW = H * W
    CHW = C * HW

    F_ = params["wf"].shape[1]
    H0 = params["w0"].shape[1]
    NC = params["wl"].shape[1]

    # -------- wrapper-side parameter prep (done once per call) --------------
    # GAP folded into the projection weight: x.reshape(B, C*HW) @ wf_eff == gap @ wf
    wf_eff = (jnp.repeat(params["wf"], HW, axis=0) / HW).astype(mxu_dtype)   # [C*HW, F]
    bf = params["bf"].astype(jnp.float32)                                    # [1, F]

    # BatchNorm (eval, selected domain) folded into Linear0.
    gamma = params["bn_gamma"][bn_domain]
    beta = params["bn_beta"][bn_domain]
    mean = params["bn_mean"][bn_domain]
    var = params["bn_var"][bn_domain]
    scale = gamma * jax.lax.rsqrt(var + BN_EPS)                              # [H0]
    w0f = (params["w0"] * scale[None, :]).astype(mxu_dtype)                  # [F, H0]
    b0f = ((params["b0"][0] - mean) * scale + beta)[None, :].astype(jnp.float32)

    wl = params["wl"].astype(mxu_dtype)                                      # [H0, NC]
    bl = params["bl"].astype(jnp.float32)                                    # [1, NC]

    # -------- batch tiling ----------------------------------------------------
    TB = 128 if B >= 128 else max(8, ((B + 7) // 8) * 8)   # f32 sublane multiple
    n_blocks = pl.cdiv(B, TB)
    B_pad = n_blocks * TB

    x_flat = x.reshape(B, CHW).astype(jnp.float32)
    if B_pad != B:
        # zero-pad so the padded rows can never feed inf/NaN into exp()
        x_flat = jnp.pad(x_flat, ((0, B_pad - B), (0, 0)))
    x_flat = x_flat.astype(mxu_dtype)

    used_w = F_ + H0 + 2 * NC
    OUT_W = ((used_w + LANE - 1) // LANE) * LANE

    kernel = functools.partial(danet_kernel, f_dim=F_, h_dim=H0, nc_dim=NC)

    def resident(shape):
        return pl.BlockSpec(shape, lambda i: (0, 0))

    slab = pl.pallas_call(
        kernel,
        grid=(n_blocks,),
        in_specs=[
            pl.BlockSpec((TB, CHW), lambda i: (i, 0)),   # x: per-batch-block
            resident(wf_eff.shape),
            resident(bf.shape),
            resident(w0f.shape),
            resident(b0f.shape),
            resident(wl.shape),
            resident(bl.shape),
        ],
        out_specs=pl.BlockSpec((TB, OUT_W), lambda i: (i, 0)),
        out_shape=jax.ShapeDtypeStruct((B_pad, OUT_W), jnp.float32),
        compiler_params=pltpu.CompilerParams(
            dimension_semantics=("parallel",),
            vmem_limit_bytes=32 * 1024 * 1024,
        ),
    )(x_flat, wf_eff, bf, w0f, b0f, wl, bl)

    slab = slab[:B]
    feat = slab[:, :F_]
    h0 = slab[:, F_:F_ + H0]
    logits = slab[:, F_ + H0:F_ + H0 + NC]
    probs = slab[:, F_ + H0 + NC:F_ + H0 + 2 * NC]
    return {"feat": feat, "0": h0, "logits": logits, "probs": probs}


def init_params(key, in_channels, feat_dim, hidden_dim, num_classes, num_domains_bn):
    """Deterministic init matching DANet.__init__ conventions:
       Linear: kaiming_normal_ (fan_in, std=sqrt(2/fan_in)), bias = 0
       BN: weight = 1, bias = 0, running_mean = 0, running_var = 1."""
    k1, k2, k3 = jax.random.split(key, 3)

    def kaiming(k, fan_in, fan_out):
        std = (2.0 / fan_in) ** 0.5
        # PyTorch weight is [out, in]; we store the transpose [in, out].
        return (jax.random.normal(k, (fan_out, fan_in), jnp.float32) * std).T

    params = {
        # stand-in backbone projection (applied after GAP)
        "wf": kaiming(k1, in_channels, feat_dim),
        "bf": jnp.zeros((1, feat_dim), jnp.float32),
        # FC['0'] linear
        "w0": kaiming(k2, feat_dim, hidden_dim),
        "b0": jnp.zeros((1, hidden_dim), jnp.float32),
        # BatchNormDomain(hidden_dim, num_domains_bn, BatchNorm1d) — per-domain stats
        "bn_gamma": jnp.ones((num_domains_bn, hidden_dim), jnp.float32),
        "bn_beta": jnp.zeros((num_domains_bn, hidden_dim), jnp.float32),
        "bn_mean": jnp.zeros((num_domains_bn, hidden_dim), jnp.float32),
        "bn_var": jnp.ones((num_domains_bn, hidden_dim), jnp.float32),
        # FC['logits'] linear
        "wl": kaiming(k3, hidden_dim, num_classes),
        "bl": jnp.zeros((1, num_classes), jnp.float32),
    }
    return params


def danet_reference(x, params, bn_domain=0):
    """Pure-JAX reference of the same forward pass for validation."""
    B, C, H, W = x.shape
    gap = jnp.mean(x.reshape(B, C, H * W), axis=-1)
    feat = gap @ params["wf"] + params["bf"]
    h = feat @ params["w0"] + params["b0"]
    h = (h - params["bn_mean"][bn_domain]) / jnp.sqrt(params["bn_var"][bn_domain] + BN_EPS)
    h = h * params["bn_gamma"][bn_domain] + params["bn_beta"][bn_domain]
    h = jnp.maximum(h, 0.0)
    logits = h @ params["wl"] + params["bl"]
    probs = jax.nn.softmax(logits, axis=1)
    return {"feat": feat, "0": h, "logits": logits, "probs": probs}


if __name__ == "__main__":
    B, C, H, W = 2, 4, 16, 16
    FEAT_DIM, HIDDEN, NUM_CLASSES, NUM_DOMAINS_BN = 32, 32, 8, 2

    key = jax.random.PRNGKey(0)
    kx, kp = jax.random.split(key)
    x = jax.random.normal(kx, (B, C, H, W), jnp.float32)
    params = init_params(kp, C, FEAT_DIM, HIDDEN, NUM_CLASSES, NUM_DOMAINS_BN)

    # f32 MXU operands here for tight-tolerance validation; pass
    # mxu_dtype=jnp.bfloat16 for peak MXU throughput on v6e/v7x.
    out = danet_forward(x, params, bn_domain=0, mxu_dtype=jnp.float32)
    jax.block_until_ready(out)

    ref = danet_reference(x, params, bn_domain=0)
    tols = {"feat": 1e-4, "0": 1e-4, "logits": 1e-4, "probs": 2e-3}
    for k in ("feat", "0", "logits", "probs"):
        assert out[k].shape == ref[k].shape, (k, out[k].shape, ref[k].shape)
        assert jnp.allclose(out[k], ref[k], atol=tols[k], rtol=tols[k]), f"mismatch in {k}"

    print("KERNEL_OK")
</pallas_src>

<mosaic_0001>
module attributes {stable_mosaic.version = 11 : i64} {
  func.func @danet_kernel(%arg0: i32, %arg1: memref<8x1024xf32, #tpu.memory_space<vmem>>, %arg2: memref<1024x32xf32, #tpu.memory_space<vmem>>, %arg3: memref<1x32xf32, #tpu.memory_space<vmem>>, %arg4: memref<32x32xf32, #tpu.memory_space<vmem>>, %arg5: memref<1x32xf32, #tpu.memory_space<vmem>>, %arg6: memref<32x8xf32, #tpu.memory_space<vmem>>, %arg7: memref<1x8xf32, #tpu.memory_space<vmem>>, %arg8: memref<8x128xf32, #tpu.memory_space<vmem>>) attributes {dimension_semantics = [#tpu.dimension_semantics<parallel>], iteration_bounds = array<i64: 1>, scalar_prefetch = 0 : i64, scratch_operands = 0 : i64, tpu.core_type = #tpu.core_type<tc>, window_params = [{transform_indices = @transform_0, window_bounds = array<i64: 8, 1024>}, {pipeline_mode = #tpu.pipeline_mode<synchronous>, transform_indices = @transform_1, window_bounds = array<i64: 1024, 32>}, {pipeline_mode = #tpu.pipeline_mode<synchronous>, transform_indices = @transform_2, window_bounds = array<i64: 1, 32>}, {pipeline_mode = #tpu.pipeline_mode<synchronous>, transform_indices = @transform_3, window_bounds = array<i64: 32, 32>}, {pipeline_mode = #tpu.pipeline_mode<synchronous>, transform_indices = @transform_4, window_bounds = array<i64: 1, 32>}, {pipeline_mode = #tpu.pipeline_mode<synchronous>, transform_indices = @transform_5, window_bounds = array<i64: 32, 8>}, {pipeline_mode = #tpu.pipeline_mode<synchronous>, transform_indices = @transform_6, window_bounds = array<i64: 1, 8>}, {transform_indices = @transform_7, window_bounds = array<i64: 8, 128>}]} {
    %c0 = arith.constant 0 : index
    %c0_0 = arith.constant 0 : index
    %0 = vector.load %arg1[%c0, %c0_0] : memref<8x1024xf32, #tpu.memory_space<vmem>>, vector<8x1024xf32>
    %c0_1 = arith.constant 0 : index
    %c0_2 = arith.constant 0 : index
    %1 = vector.load %arg2[%c0_1, %c0_2] : memref<1024x32xf32, #tpu.memory_space<vmem>>, vector<1024x32xf32>
    %cst = arith.constant dense<0.000000e+00> : vector<8x32xf32>
    %2 = tpu.matmul %0, %1, %cst {dimension_numbers = #tpu.dot_dimension_numbers<[1], [0], [0], [1], [0, 0, 1, 1], [], []>} : vector<8x1024xf32>, vector<1024x32xf32>, vector<8x32xf32> -> vector<8x32xf32>
    %c0_3 = arith.constant 0 : index
    %c0_4 = arith.constant 0 : index
    %3 = vector.load %arg3[%c0_3, %c0_4] : memref<1x32xf32, #tpu.memory_space<vmem>>, vector<1x32xf32>
    %4 = vector.broadcast %3 : vector<1x32xf32> to vector<8x32xf32>
    %5 = arith.addf %2, %4 : vector<8x32xf32>
    %c0_5 = arith.constant 0 : index
    %c0_6 = arith.constant 0 : index
    %6 = vector.load %arg4[%c0_5, %c0_6] : memref<32x32xf32, #tpu.memory_space<vmem>>, vector<32x32xf32>
    %cst_7 = arith.constant dense<0.000000e+00> : vector<8x32xf32>
    %7 = tpu.matmul %5, %6, %cst_7 {dimension_numbers = #tpu.dot_dimension_numbers<[1], [0], [0], [1], [0, 0, 1, 1], [], []>} : vector<8x32xf32>, vector<32x32xf32>, vector<8x32xf32> -> vector<8x32xf32>
    %c0_8 = arith.constant 0 : index
    %c0_9 = arith.constant 0 : index
    %8 = vector.load %arg5[%c0_8, %c0_9] : memref<1x32xf32, #tpu.memory_space<vmem>>, vector<1x32xf32>
    %9 = vector.broadcast %8 : vector<1x32xf32> to vector<8x32xf32>
    %10 = arith.addf %7, %9 : vector<8x32xf32>
    %cst_10 = arith.constant 0.000000e+00 : f32
    %11 = vector.broadcast %cst_10 : f32 to vector<8x32xf32>
    %12 = arith.maximumf %10, %11 : vector<8x32xf32>
    %c0_11 = arith.constant 0 : index
    %c0_12 = arith.constant 0 : index
    %13 = vector.load %arg6[%c0_11, %c0_12] : memref<32x8xf32, #tpu.memory_space<vmem>>, vector<32x8xf32>
    %cst_13 = arith.constant dense<0.000000e+00> : vector<8x8xf32>
    %14 = tpu.matmul %12, %13, %cst_13 {dimension_numbers = #tpu.dot_dimension_numbers<[1], [0], [0], [1], [0, 0, 1, 1], [], []>} : vector<8x32xf32>, vector<32x8xf32>, vector<8x8xf32> -> vector<8x8xf32>
    %c0_14 = arith.constant 0 : index
    %c0_15 = arith.constant 0 : index
    %15 = vector.load %arg7[%c0_14, %c0_15] : memref<1x8xf32, #tpu.memory_space<vmem>>, vector<1x8xf32>
    %16 = vector.broadcast %15 : vector<1x8xf32> to vector<8x8xf32>
    %17 = arith.addf %14, %16 : vector<8x8xf32>
    %cst_16 = arith.constant dense<0xFF800000> : vector<8xf32>
    %18 = vector.multi_reduction <maximumf>, %17, %cst_16 [1] : vector<8x8xf32> to vector<8xf32>
    %19 = vector.shape_cast %18 : vector<8xf32> to vector<8x1xf32>
    %20 = vector.broadcast %19 : vector<8x1xf32> to vector<8x8xf32>
    %21 = arith.subf %17, %20 : vector<8x8xf32>
    %22 = math.exp %21 : vector<8x8xf32>
    %cst_17 = arith.constant dense<0.000000e+00> : vector<8xf32>
    %23 = vector.multi_reduction <add>, %22, %cst_17 [1] : vector<8x8xf32> to vector<8xf32>
    %24 = vector.shape_cast %23 : vector<8xf32> to vector<8x1xf32>
    %25 = tpu.reciprocal %24 {approx = true} : vector<8x1xf32> -> vector<8x1xf32>
    %26 = vector.broadcast %25 : vector<8x1xf32> to vector<8x8xf32>
    %27 = arith.mulf %22, %26 : vector<8x8xf32>
    %cst_18 = arith.constant 0.000000e+00 : f32
    %28 = vector.broadcast %cst_18 : f32 to vector<8x48xf32>
    %29 = tpu.concatenate %5, %12, %17, %27, %28 in 1 : vector<8x32xf32>, vector<8x32xf32>, vector<8x8xf32>, vector<8x8xf32>, vector<8x48xf32> -> vector<8x128xf32>
    %c0_19 = arith.constant 0 : index
    %c0_20 = arith.constant 0 : index
    %30 = vector.load %arg8[%c0_19, %c0_20] : memref<8x128xf32, #tpu.memory_space<vmem>>, vector<8x128xf32>
    tpu.vector_store %arg8[%c0_19, %c0_20], %29 {strides = array<i32>} : memref<8x128xf32, #tpu.memory_space<vmem>>, vector<8x128xf32>,
    return
  }
  func.func @transform_0(%arg0: i32) -> (i32, i32) {
    %c0_i32 = arith.constant 0 : i32
    %c0_i32_0 = arith.constant 0 : i32
    return %arg0, %c0_i32 : i32, i32
  }
  func.func @transform_1(%arg0: i32) -> (i32, i32) {
    %c0_i32 = arith.constant 0 : i32
    %c0_i32_0 = arith.constant 0 : i32
    %c0_i32_1 = arith.constant 0 : i32
    return %c0_i32, %c0_i32_0 : i32, i32
  }
  func.func @transform_2(%arg0: i32) -> (i32, i32) {
    %c0_i32 = arith.constant 0 : i32
    %c0_i32_0 = arith.constant 0 : i32
    %c0_i32_1 = arith.constant 0 : i32
    return %c0_i32, %c0_i32_0 : i32, i32
  }
  func.func @transform_3(%arg0: i32) -> (i32, i32) {
    %c0_i32 = arith.constant 0 : i32
    %c0_i32_0 = arith.constant 0 : i32
    %c0_i32_1 = arith.constant 0 : i32
    return %c0_i32, %c0_i32_0 : i32, i32
  }
  func.func @transform_4(%arg0: i32) -> (i32, i32) {
    %c0_i32 = arith.constant 0 : i32
    %c0_i32_0 = arith.constant 0 : i32
    %c0_i32_1 = arith.constant 0 : i32
    return %c0_i32, %c0_i32_0 : i32, i32
  }
  func.func @transform_5(%arg0: i32) -> (i32, i32) {
    %c0_i32 = arith.constant 0 : i32
    %c0_i32_0 = arith.constant 0 : i32
    %c0_i32_1 = arith.constant 0 : i32
    return %c0_i32, %c0_i32_0 : i32, i32
  }
  func.func @transform_6(%arg0: i32) -> (i32, i32) {
    %c0_i32 = arith.constant 0 : i32
    %c0_i32_0 = arith.constant 0 : i32
    %c0_i32_1 = arith.constant 0 : i32
    return %c0_i32, %c0_i32_0 : i32, i32
  }
  func.func @transform_7(%arg0: i32) -> (i32, i32) {
    %c0_i32 = arith.constant 0 : i32
    %c0_i32_0 = arith.constant 0 : i32
    return %arg0, %c0_i32 : i32, i32
  }
}

</mosaic_0001>

<llo_original>
// kernel: tpu_custom_call.1
$region0: #{tpu_custom_call.1}
  #allocation0 [shape = 'u32[]', space=smem, size = 0x4, offset = 0x4, fixed_abs, tag = 'smem constant byte address 0x4 - core index']
  #allocation1 [shape = 'u32[144,128]{1,0:T(1,128)}', space=vmem, size = 0x12000, scoped, tag = 'internal scratch']
  %s0 = inlined_call_operand.vmem [shape: f32[8,1024], index: 0, kind: input, shape index: {}]
  %s1 = inlined_call_operand.vmem [shape: f32[1024,32], index: 1, kind: input, shape index: {}]
  %s2 = inlined_call_operand.vmem [shape: f32[1,32], index: 2, kind: input, shape index: {}]
  %s3 = inlined_call_operand.vmem [shape: f32[32,32], index: 3, kind: input, shape index: {}]
  %s4 = inlined_call_operand.vmem [shape: f32[1,32], index: 4, kind: input, shape index: {}]
  %s5 = inlined_call_operand.vmem [shape: f32[32,8], index: 5, kind: input, shape index: {}]
  %s6 = inlined_call_operand.vmem [shape: f32[1,8], index: 6, kind: input, shape index: {}]
  %s7 = inlined_call_operand.hbm [shape: f32[8,128], index: 7, kind: output, shape index: {}]
  %s8 = sld [smem:[#allocation0]]
  $region38: #{tpu_custom_call.1} parent=0
    _
  %s10 = ssub.s32 1, %s8
  %s11 = scalar_select 0, %s10, %s8
  $region1: #{tpu_custom_call.1} parent=0
    #allocation2 [shape = 'u8[4096]{0}', space=vmem, size = 0x1000, scoped, tag = 'output window, operand 0, single buffered']
    #allocation3 [shape = 's32[1]{0}', space=sflag, size = 0x4, scoped, tag = 'scoped memory for tpu_custom_call.1']
    %12 = vsyncpa [#allocation3], 0
    // Predicated region
    $region2: #{tpu_custom_call.1} parent=1 // pred_check
      _
    $region3: #{tpu_custom_call.1} parent=1 // pred_check_branch
      %14 = sbr.rel (0) target = $region5
    $region4: #{tpu_custom_call.1} parent=1 // pred_region
      _
    $region5: #{tpu_custom_call.1} parent=1 // pred_fallthru
      _
    // Predicated region
    $region6: #{tpu_custom_call.1} parent=1 // pred_check
      _
    $region7: #{tpu_custom_call.1} parent=1 // pred_check_branch
      %16 = sbr.rel (0) target = $region9
    $region8: #{tpu_custom_call.1} parent=1 // pred_region
      _
    $region9: #{tpu_custom_call.1} parent=1 // pred_fallthru
      _
    // Predicated region
    $region10: #{tpu_custom_call.1} parent=1 // pred_check
      _
    $region11: #{tpu_custom_call.1} parent=1 // pred_check_branch
      %18 = sbr.rel (0) target = $region13
    $region12: #{tpu_custom_call.1} parent=1 // pred_region
      _
    $region13: #{tpu_custom_call.1} parent=1 // pred_fallthru
      _
    // Predicated region
    $region14: #{tpu_custom_call.1} parent=1 // pred_check
      _
    $region15: #{tpu_custom_call.1} parent=1 // pred_check_branch
      %20 = sbr.rel (0) target = $region17
    $region16: #{tpu_custom_call.1} parent=1 // pred_region
      _
    $region17: #{tpu_custom_call.1} parent=1 // pred_fallthru
      _
    // Predicated region
    $region18: #{tpu_custom_call.1} parent=1 // pred_check
      _
    $region19: #{tpu_custom_call.1} parent=1 // pred_check_branch
      %22 = sbr.rel (0) target = $region21
    $region20: #{tpu_custom_call.1} parent=1 // pred_region
      _
    $region21: #{tpu_custom_call.1} parent=1 // pred_fallthru
      _
    // Predicated region
    $region22: #{tpu_custom_call.1} parent=1 // pred_check
      _
    $region23: #{tpu_custom_call.1} parent=1 // pred_check_branch
      %24 = sbr.rel (0) target = $region25
    $region24: #{tpu_custom_call.1} parent=1 // pred_region
      _
    $region25: #{tpu_custom_call.1} parent=1 // pred_fallthru
      _
    // Predicated region
    $region26: #{tpu_custom_call.1} parent=1 // pred_check
      _
    $region27: #{tpu_custom_call.1} parent=1 // pred_check_branch
      %26 = sbr.rel (0) target = $region29
    $region28: #{tpu_custom_call.1} parent=1 // pred_region
      _
    $region29: #{tpu_custom_call.1} parent=1 // pred_fallthru
      _
    %v27 = vld [vmem:[%s0] sm:$0xff]
    %v28 = vld [vmem:[%s0 + $0x8] sm:$0xff]
    %v29 = vld [vmem:[%s0 + $0x10] sm:$0xff]
    %v30 = vld [vmem:[%s0 + $0x18] sm:$0xff]
    %v31 = vld [vmem:[%s0 + $0x20] sm:$0xff]
    %v32 = vld [vmem:[%s0 + $0x28] sm:$0xff]
    %v33 = vld [vmem:[%s0 + $0x30] sm:$0xff]
    %v34 = vld [vmem:[%s0 + $0x38] sm:$0xff]
    %v35 = vld [vmem:[%s1] sm:$0xff]
    %v36 = vld [vmem:[%s1 + $0x8] sm:$0xff]
    %v37 = vld [vmem:[%s1 + $0x10] sm:$0xff]
    %v38 = vld [vmem:[%s1 + $0x18] sm:$0xff]
    %v39 = vld [vmem:[%s1 + $0x20] sm:$0xff]
    %v40 = vld [vmem:[%s1 + $0x28] sm:$0xff]
    %v41 = vld [vmem:[%s1 + $0x30] sm:$0xff]
    %v42 = vld [vmem:[%s1 + $0x38] sm:$0xff]
    %v43 = vld [vmem:[%s1 + $0x40] sm:$0xff]
    %v44 = vld [vmem:[%s1 + $0x48] sm:$0xff]
    %v45 = vld [vmem:[%s1 + $0x50] sm:$0xff]
    %v46 = vld [vmem:[%s1 + $0x58] sm:$0xff]
    %v47 = vld [vmem:[%s1 + $0x60] sm:$0xff]
    %v48 = vld [vmem:[%s1 + $0x68] sm:$0xff]
    %v49 = vld [vmem:[%s1 + $0x70] sm:$0xff]
    %v50 = vld [vmem:[%s1 + $0x78] sm:$0xff]
    %v51 = vld [vmem:[%s1 + $0x80] sm:$0xff]
    %v52 = vld [vmem:[%s1 + $0x88] sm:$0xff]
    %v53 = vld [vmem:[%s1 + $0x90] sm:$0xff]
    %v54 = vld [vmem:[%s1 + $0x98] sm:$0xff]
    %v55 = vld [vmem:[%s1 + $0xa0] sm:$0xff]
    %v56 = vld [vmem:[%s1 + $0xa8] sm:$0xff]
    %v57 = vld [vmem:[%s1 + $0xb0] sm:$0xff]
    %v58 = vld [vmem:[%s1 + $0xb8] sm:$0xff]
    %v59 = vld [vmem:[%s1 + $0xc0] sm:$0xff]
    %v60 = vld [vmem:[%s1 + $0xc8] sm:$0xff]
    %v61 = vld [vmem:[%s1 + $0xd0] sm:$0xff]
    %v62 = vld [vmem:[%s1 + $0xd8] sm:$0xff]
    %v63 = vld [vmem:[%s1 + $0xe0] sm:$0xff]
    %v64 = vld [vmem:[%s1 + $0xe8] sm:$0xff]
    %v65 = vld [vmem:[%s1 + $0xf0] sm:$0xff]
    %v66 = vld [vmem:[%s1 + $0xf8] sm:$0xff]
    %v67 = vld [vmem:[%s1 + $0x100] sm:$0xff]
    %v68 = vld [vmem:[%s1 + $0x108] sm:$0xff]
    %v69 = vld [vmem:[%s1 + $0x110] sm:$0xff]
    %v70 = vld [vmem:[%s1 + $0x118] sm:$0xff]
    %v71 = vld [vmem:[%s1 + $0x120] sm:$0xff]
    %v72 = vld [vmem:[%s1 + $0x128] sm:$0xff]
    %v73 = vld [vmem:[%s1 + $0x130] sm:$0xff]
    %v74 = vld [vmem:[%s1 + $0x138] sm:$0xff]
    %v75 = vld [vmem:[%s1 + $0x140] sm:$0xff]
    %v76 = vld [vmem:[%s1 + $0x148] sm:$0xff]
    %v77 = vld [vmem:[%s1 + $0x150] sm:$0xff]
    %v78 = vld [vmem:[%s1 + $0x158] sm:$0xff]
    %v79 = vld [vmem:[%s1 + $0x160] sm:$0xff]
    %v80 = vld [vmem:[%s1 + $0x168] sm:$0xff]
    %v81 = vld [vmem:[%s1 + $0x170] sm:$0xff]
    %v82 = vld [vmem:[%s1 + $0x178] sm:$0xff]
    %v83 = vld [vmem:[%s1 + $0x180] sm:$0xff]
    %v84 = vld [vmem:[%s1 + $0x188] sm:$0xff]
    %v85 = vld [vmem:[%s1 + $0x190] sm:$0xff]
    %v86 = vld [vmem:[%s1 + $0x198] sm:$0xff]
    %v87 = vld [vmem:[%s1 + $0x1a0] sm:$0xff]
    %v88 = vld [vmem:[%s1 + $0x1a8] sm:$0xff]
    %v89 = vld [vmem:[%s1 + $0x1b0] sm:$0xff]
    %v90 = vld [vmem:[%s1 + $0x1b8] sm:$0xff]
    %v91 = vld [vmem:[%s1 + $0x1c0] sm:$0xff]
    %v92 = vld [vmem:[%s1 + $0x1c8] sm:$0xff]
    %v93 = vld [vmem:[%s1 + $0x1d0] sm:$0xff]
    %v94 = vld [vmem:[%s1 + $0x1d8] sm:$0xff]
    %v95 = vld [vmem:[%s1 + $0x1e0] sm:$0xff]
    %v96 = vld [vmem:[%s1 + $0x1e8] sm:$0xff]
    %v97 = vld [vmem:[%s1 + $0x1f0] sm:$0xff]
    %v98 = vld [vmem:[%s1 + $0x1f8] sm:$0xff]
    %v99 = vld [vmem:[%s1 + $0x200] sm:$0xff]
    %v100 = vld [vmem:[%s1 + $0x208] sm:$0xff]
    %v101 = vld [vmem:[%s1 + $0x210] sm:$0xff]
    %v102 = vld [vmem:[%s1 + $0x218] sm:$0xff]
    %v103 = vld [vmem:[%s1 + $0x220] sm:$0xff]
    %v104 = vld [vmem:[%s1 + $0x228] sm:$0xff]
    %v105 = vld [vmem:[%s1 + $0x230] sm:$0xff]
    %v106 = vld [vmem:[%s1 + $0x238] sm:$0xff]
    %v107 = vld [vmem:[%s1 + $0x240] sm:$0xff]
    %v108 = vld [vmem:[%s1 + $0x248] sm:$0xff]
    %v109 = vld [vmem:[%s1 + $0x250] sm:$0xff]
    %v110 = vld [vmem:[%s1 + $0x258] sm:$0xff]
    %v111 = vld [vmem:[%s1 + $0x260] sm:$0xff]
    %v112 = vld [vmem:[%s1 + $0x268] sm:$0xff]
    %v113 = vld [vmem:[%s1 + $0x270] sm:$0xff]
    %v114 = vld [vmem:[%s1 + $0x278] sm:$0xff]
    %v115 = vld [vmem:[%s1 + $0x280] sm:$0xff]
    %v116 = vld [vmem:[%s1 + $0x288] sm:$0xff]
    %v117 = vld [vmem:[%s1 + $0x290] sm:$0xff]
    %v118 = vld [vmem:[%s1 + $0x298] sm:$0xff]
    %v119 = vld [vmem:[%s1 + $0x2a0] sm:$0xff]
    %v120 = vld [vmem:[%s1 + $0x2a8] sm:$0xff]
    %v121 = vld [vmem:[%s1 + $0x2b0] sm:$0xff]
    %v122 = vld [vmem:[%s1 + $0x2b8] sm:$0xff]
    %v123 = vld [vmem:[%s1 + $0x2c0] sm:$0xff]
    %v124 = vld [vmem:[%s1 + $0x2c8] sm:$0xff]
    %v125 = vld [vmem:[%s1 + $0x2d0] sm:$0xff]
    %v126 = vld [vmem:[%s1 + $0x2d8] sm:$0xff]
    %v127 = vld [vmem:[%s1 + $0x2e0] sm:$0xff]
    %v128 = vld [vmem:[%s1 + $0x2e8] sm:$0xff]
    %v129 = vld [vmem:[%s1 + $0x2f0] sm:$0xff]
    %v130 = vld [vmem:[%s1 + $0x2f8] sm:$0xff]
    %v131 = vld [vmem:[%s1 + $0x300] sm:$0xff]
    %v132 = vld [vmem:[%s1 + $0x308] sm:$0xff]
    %v133 = vld [vmem:[%s1 + $0x310] sm:$0xff]
    %v134 = vld [vmem:[%s1 + $0x318] sm:$0xff]
    %v135 = vld [vmem:[%s1 + $0x320] sm:$0xff]
    %v136 = vld [vmem:[%s1 + $0x328] sm:$0xff]
    %v137 = vld [vmem:[%s1 + $0x330] sm:$0xff]
    %v138 = vld [vmem:[%s1 + $0x338] sm:$0xff]
    %v139 = vld [vmem:[%s1 + $0x340] sm:$0xff]
    %v140 = vld [vmem:[%s1 + $0x348] sm:$0xff]
    %v141 = vld [vmem:[%s1 + $0x350] sm:$0xff]
    %v142 = vld [vmem:[%s1 + $0x358] sm:$0xff]
    %v143 = vld [vmem:[%s1 + $0x360] sm:$0xff]
    %v144 = vld [vmem:[%s1 + $0x368] sm:$0xff]
    %v145 = vld [vmem:[%s1 + $0x370] sm:$0xff]
    %v146 = vld [vmem:[%s1 + $0x378] sm:$0xff]
    %v147 = vld [vmem:[%s1 + $0x380] sm:$0xff]
    %v148 = vld [vmem:[%s1 + $0x388] sm:$0xff]
    %v149 = vld [vmem:[%s1 + $0x390] sm:$0xff]
    %v150 = vld [vmem:[%s1 + $0x398] sm:$0xff]
    %v151 = vld [vmem:[%s1 + $0x3a0] sm:$0xff]
    %v152 = vld [vmem:[%s1 + $0x3a8] sm:$0xff]
    %v153 = vld [vmem:[%s1 + $0x3b0] sm:$0xff]
    %v154 = vld [vmem:[%s1 + $0x3b8] sm:$0xff]
    %v155 = vld [vmem:[%s1 + $0x3c0] sm:$0xff]
    %v156 = vld [vmem:[%s1 + $0x3c8] sm:$0xff]
    %v157 = vld [vmem:[%s1 + $0x3d0] sm:$0xff]
    %v158 = vld [vmem:[%s1 + $0x3d8] sm:$0xff]
    %v159 = vld [vmem:[%s1 + $0x3e0] sm:$0xff]
    %v160 = vld [vmem:[%s1 + $0x3e8] sm:$0xff]
    %v161 = vld [vmem:[%s1 + $0x3f0] sm:$0xff]
    %v162 = vld [vmem:[%s1 + $0x3f8] sm:$0xff]
    %v163 = vld [vmem:[%s2] sm:$0x1]
    %v165 = vlaneseq
    %v166 = vshrl.u32 %v165, 7
    %v167 = vsub.s32 0, %v166
    %v168 = vrot.slane %v163, %v167
    %170 = vmatprep.subr.mxu0 0.0
    %171 = vmatpush1.msra.mxu0 %v50
    %172 = vmatprep.subr.mxu0 0.0
    %173 = vmatpush1.msra.mxu0 %v49
    %174 = vmatprep.subr.mxu0 0.0
    %175 = vmatpush1.msra.mxu0 %v48
    %176 = vmatprep.subr.mxu0 0.0
    %177 = vmatpush1.msra.mxu0 %v47
    %178 = vmatprep.subr.mxu0 0.0
    %179 = vmatpush1.msra.mxu0 %v46
    %180 = vmatprep.subr.mxu0 0.0
    %181 = vmatpush1.msra.mxu0 %v45
    %182 = vmatprep.subr.mxu0 0.0
    %183 = vmatpush1.msra.mxu0 %v44
    %184 = vmatprep.subr.mxu0 0.0
    %185 = vmatpush1.msra.mxu0 %v43
    %186 = vmatprep.subr.mxu0 0.0
    %187 = vmatpush1.msra.mxu0 %v42
    %188 = vmatprep.subr.mxu0 0.0
    %189 = vmatpush1.msra.mxu0 %v41
    %190 = vmatprep.subr.mxu0 0.0
    %191 = vmatpush1.msra.mxu0 %v40
    %192 = vmatprep.subr.mxu0 0.0
    %193 = vmatpush1.msra.mxu0 %v39
    %194 = vmatprep.subr.mxu0 0.0
    %195 = vmatpush1.msra.mxu0 %v38
    %196 = vmatprep.subr.mxu0 0.0
    %197 = vmatpush1.msra.mxu0 %v37
    %198 = vmatprep.subr.mxu0 0.0
    %199 = vmatpush1.msra.mxu0 %v36
    %200 = vmatprep.subr.mxu0 0.0
    %201 = vmatpush1.msra.mxu0 %v35
    %202 = vmatprep.subr.mxu0 0.0
    %203 = vmatpush2.msra.mxu0 %v66
    %204 = vmatprep.subr.mxu0 0.0
    %205 = vmatpush2.msra.mxu0 %v65
    %206 = vmatprep.subr.mxu0 0.0
    %207 = vmatpush2.msra.mxu0 %v64
    %208 = vmatprep.subr.mxu0 0.0
    %209 = vmatpush2.msra.mxu0 %v63
    %210 = vmatprep.subr.mxu0 0.0
    %211 = vmatpush2.msra.mxu0 %v62
    %212 = vmatprep.subr.mxu0 0.0
    %213 = vmatpush2.msra.mxu0 %v61
    %214 = vmatprep.subr.mxu0 0.0
    %215 = vmatpush2.msra.mxu0 %v60
    %216 = vmatprep.subr.mxu0 0.0
    %217 = vmatpush2.msra.mxu0 %v59
    %218 = vmatprep.subr.mxu0 0.0
    %219 = vmatpush2.msra.mxu0 %v58
    %220 = vmatprep.subr.mxu0 0.0
    %221 = vmatpush2.msra.mxu0 %v57
    %222 = vmatprep.subr.mxu0 0.0
    %223 = vmatpush2.msra.mxu0 %v56
    %224 = vmatprep.subr.mxu0 0.0
    %225 = vmatpush2.msra.mxu0 %v55
    %226 = vmatprep.subr.mxu0 0.0
    %227 = vmatpush2.msra.mxu0 %v54
    %228 = vmatprep.subr.mxu0 0.0
    %229 = vmatpush2.msra.mxu0 %v53
    %230 = vmatprep.subr.mxu0 0.0
    %231 = vmatpush2.msra.mxu0 %v52
    %232 = vmatprep.subr.mxu0 0.0
    %233 = vmatpush2.msra.mxu0 %v51
    %234 = vmatprep.mubr.f32.mxu0 %v28
    %235 = vmatmul.mubr.f32.gmra.mxu0 %v27
    %v236 = vpop.f32.mrf.mxu0
    %v237 = vadd.f32 %v168, %v236
    %v238 = vpop.f32.mrf.mxu0
    %239 = vdwg.mxu0
    %240 = vmatprep.subr.mxu0 0.0
    %241 = vmatpush1.msra.mxu0 %v82
    %242 = vmatprep.subr.mxu0 0.0
    %243 = vmatpush1.msra.mxu0 %v81
    %244 = vmatprep.subr.mxu0 0.0
    %245 = vmatpush1.msra.mxu0 %v80
    %246 = vmatprep.subr.mxu0 0.0
    %247 = vmatpush1.msra.mxu0 %v79
    %248 = vmatprep.subr.mxu0 0.0
    %249 = vmatpush1.msra.mxu0 %v78
    %250 = vmatprep.subr.mxu0 0.0
    %251 = vmatpush1.msra.mxu0 %v77
    %252 = vmatprep.subr.mxu0 0.0
    %253 = vmatpush1.msra.mxu0 %v76
    %254 = vmatprep.subr.mxu0 0.0
    %255 = vmatpush1.msra.mxu0 %v75
    %256 = vmatprep.subr.mxu0 0.0
    %257 = vmatpush1.msra.mxu0 %v74
    %258 = vmatprep.subr.mxu0 0.0
    %259 = vmatpush1.msra.mxu0 %v73
    %260 = vmatprep.subr.mxu0 0.0
    %261 = vmatpush1.msra.mxu0 %v72
    %262 = vmatprep.subr.mxu0 0.0
    %263 = vmatpush1.msra.mxu0 %v71
    %264 = vmatprep.subr.mxu0 0.0
    %265 = vmatpush1.msra.mxu0 %v70
    %266 = vmatprep.subr.mxu0 0.0
    %267 = vmatpush1.msra.mxu0 %v69
    %268 = vmatprep.subr.mxu0 0.0
    %269 = vmatpush1.msra.mxu0 %v68
    %270 = vmatprep.subr.mxu0 0.0
    %271 = vmatpush1.msra.mxu0 %v67
    %272 = vmatprep.subr.mxu0 0.0
    %273 = vmatpush2.msra.mxu0 %v98
    %274 = vmatprep.subr.mxu0 0.0
    %275 = vmatpush2.msra.mxu0 %v97
    %276 = vmatprep.subr.mxu0 0.0
    %277 = vmatpush2.msra.mxu0 %v96
    %278 = vmatprep.subr.mxu0 0.0
    %279 = vmatpush2.msra.mxu0 %v95
    %280 = vmatprep.subr.mxu0 0.0
    %281 = vmatpush2.msra.mxu0 %v94
    %282 = vmatprep.subr.mxu0 0.0
    %283 = vmatpush2.msra.mxu0 %v93
    %284 = vmatprep.subr.mxu0 0.0
    %285 = vmatpush2.msra.mxu0 %v92
    %286 = vmatprep.subr.mxu0 0.0
    %287 = vmatpush2.msra.mxu0 %v91
    %288 = vmatprep.subr.mxu0 0.0
    %289 = vmatpush2.msra.mxu0 %v90
    %290 = vmatprep.subr.mxu0 0.0
    %291 = vmatpush2.msra.mxu0 %v89
    %292 = vmatprep.subr.mxu0 0.0
    %293 = vmatpush2.msra.mxu0 %v88
    %294 = vmatprep.subr.mxu0 0.0
    %295 = vmatpush2.msra.mxu0 %v87
    %296 = vmatprep.subr.mxu0 0.0
    %297 = vmatpush2.msra.mxu0 %v86
    %298 = vmatprep.subr.mxu0 0.0
    %299 = vmatpush2.msra.mxu0 %v85
    %300 = vmatprep.subr.mxu0 0.0
    %301 = vmatpush2.msra.mxu0 %v84
    %302 = vmatprep.subr.mxu0 0.0
    %303 = vmatpush2.msra.mxu0 %v83
    %304 = vmatprep.mubr.f32.mxu0 %v30
    %305 = vmatmul.mubr.f32.gmra.mxu0 %v29
    %v306 = vpop.f32.mrf.mxu0
    %v307 = vadd.f32 %v237, %v306
    %v308 = vpop.f32.mrf.mxu0
    %309 = vdwg.mxu0
    %310 = vmatprep.subr.mxu0 0.0
    %311 = vmatpush1.msra.mxu0 %v114
    %312 = vmatprep.subr.mxu0 0.0
    %313 = vmatpush1.msra.mxu0 %v113
    %314 = vmatprep.subr.mxu0 0.0
    %315 = vmatpush1.msra.mxu0 %v112
    %316 = vmatprep.subr.mxu0 0.0
    %317 = vmatpush1.msra.mxu0 %v111
    %318 = vmatprep.subr.mxu0 0.0
    %319 = vmatpush1.msra.mxu0 %v110
    %320 = vmatprep.subr.mxu0 0.0
    %321 = vmatpush1.msra.mxu0 %v109
    %322 = vmatprep.subr.mxu0 0.0
    %323 = vmatpush1.msra.mxu0 %v108
    %324 = vmatprep.subr.mxu0 0.0
    %325 = vmatpush1.msra.mxu0 %v107
    %326 = vmatprep.subr.mxu0 0.0
    %327 = vmatpush1.msra.mxu0 %v106
    %328 = vmatprep.subr.mxu0 0.0
    %329 = vmatpush1.msra.mxu0 %v105
    %330 = vmatprep.subr.mxu0 0.0
    %331 = vmatpush1.msra.mxu0 %v104
    %332 = vmatprep.subr.mxu0 0.0
    %333 = vmatpush1.msra.mxu0 %v103
    %334 = vmatprep.subr.mxu0 0.0
    %335 = vmatpush1.msra.mxu0 %v102
    %336 = vmatprep.subr.mxu0 0.0
    %337 = vmatpush1.msra.mxu0 %v101
    %338 = vmatprep.subr.mxu0 0.0
    %339 = vmatpush1.msra.mxu0 %v100
    %340 = vmatprep.subr.mxu0 0.0
    %341 = vmatpush1.msra.mxu0 %v99
    %342 = vmatprep.subr.mxu0 0.0
    %343 = vmatpush2.msra.mxu0 %v130
    %344 = vmatprep.subr.mxu0 0.0
    %345 = vmatpush2.msra.mxu0 %v129
    %346 = vmatprep.subr.mxu0 0.0
    %347 = vmatpush2.msra.mxu0 %v128
    %348 = vmatprep.subr.mxu0 0.0
    %349 = vmatpush2.msra.mxu0 %v127
    %350 = vmatprep.subr.mxu0 0.0
    %351 = vmatpush2.msra.mxu0 %v126
    %352 = vmatprep.subr.mxu0 0.0
    %353 = vmatpush2.msra.mxu0 %v125
    %354 = vmatprep.subr.mxu0 0.0
    %355 = vmatpush2.msra.mxu0 %v124
    %356 = vmatprep.subr.mxu0 0.0
    %357 = vmatpush2.msra.mxu0 %v123
    %358 = vmatprep.subr.mxu0 0.0
    %359 = vmatpush2.msra.mxu0 %v122
    %360 = vmatprep.subr.mxu0 0.0
    %361 = vmatpush2.msra.mxu0 %v121
    %362 = vmatprep.subr.mxu0 0.0
    %363 = vmatpush2.msra.mxu0 %v120
    %364 = vmatprep.subr.mxu0 0.0
    %365 = vmatpush2.msra.mxu0 %v119
    %366 = vmatprep.subr.mxu0 0.0
    %367 = vmatpush2.msra.mxu0 %v118
    %368 = vmatprep.subr.mxu0 0.0
    %369 = vmatpush2.msra.mxu0 %v117
    %370 = vmatprep.subr.mxu0 0.0
    %371 = vmatpush2.msra.mxu0 %v116
    %372 = vmatprep.subr.mxu0 0.0
    %373 = vmatpush2.msra.mxu0 %v115
    %374 = vmatprep.mubr.f32.mxu0 %v32
    %375 = vmatmul.mubr.f32.gmra.mxu0 %v31
    %v376 = vpop.f32.mrf.mxu0
    %v377 = vadd.f32 %v307, %v376
    %v378 = vpop.f32.mrf.mxu0
    %379 = vdwg.mxu0
    %380 = vmatprep.subr.mxu0 0.0
    %381 = vmatpush1.msra.mxu0 %v146
    %382 = vmatprep.subr.mxu0 0.0
    %383 = vmatpush1.msra.mxu0 %v145
    %384 = vmatprep.subr.mxu0 0.0
    %385 = vmatpush1.msra.mxu0 %v144
    %386 = vmatprep.subr.mxu0 0.0
    %387 = vmatpush1.msra.mxu0 %v143
    %388 = vmatprep.subr.mxu0 0.0
    %389 = vmatpush1.msra.mxu0 %v142
    %390 = vmatprep.subr.mxu0 0.0
    %391 = vmatpush1.msra.mxu0 %v141
    %392 = vmatprep.subr.mxu0 0.0
    %393 = vmatpush1.msra.mxu0 %v140
    %394 = vmatprep.subr.mxu0 0.0
    %395 = vmatpush1.msra.mxu0 %v139
    %396 = vmatprep.subr.mxu0 0.0
    %397 = vmatpush1.msra.mxu0 %v138
    %398 = vmatprep.subr.mxu0 0.0
    %399 = vmatpush1.msra.mxu0 %v137
    %400 = vmatprep.subr.mxu0 0.0
    %401 = vmatpush1.msra.mxu0 %v136
    %402 = vmatprep.subr.mxu0 0.0
    %403 = vmatpush1.msra.mxu0 %v135
    %404 = vmatprep.subr.mxu0 0.0
    %405 = vmatpush1.msra.mxu0 %v134
    %406 = vmatprep.subr.mxu0 0.0
    %407 = vmatpush1.msra.mxu0 %v133
    %408 = vmatprep.subr.mxu0 0.0
    %409 = vmatpush1.msra.mxu0 %v132
    %410 = vmatprep.subr.mxu0 0.0
    %411 = vmatpush1.msra.mxu0 %v131
    %412 = vmatprep.subr.mxu0 0.0
    %413 = vmatpush2.msra.mxu0 %v162
    %414 = vmatprep.subr.mxu0 0.0
    %415 = vmatpush2.msra.mxu0 %v161
    %416 = vmatprep.subr.mxu0 0.0
    %417 = vmatpush2.msra.mxu0 %v160
    %418 = vmatprep.subr.mxu0 0.0
    %419 = vmatpush2.msra.mxu0 %v159
    %420 = vmatprep.subr.mxu0 0.0
    %421 = vmatpush2.msra.mxu0 %v158
    %422 = vmatprep.subr.mxu0 0.0
    %423 = vmatpush2.msra.mxu0 %v157
    %424 = vmatprep.subr.mxu0 0.0
    %425 = vmatpush2.msra.mxu0 %v156
    %426 = vmatprep.subr.mxu0 0.0
    %427 = vmatpush2.msra.mxu0 %v155
    %428 = vmatprep.subr.mxu0 0.0
    %429 = vmatpush2.msra.mxu0 %v154
    %430 = vmatprep.subr.mxu0 0.0
    %431 = vmatpush2.msra.mxu0 %v153
    %432 = vmatprep.subr.mxu0 0.0
    %433 = vmatpush2.msra.mxu0 %v152
    %434 = vmatprep.subr.mxu0 0.0
    %435 = vmatpush2.msra.mxu0 %v151
    %436 = vmatprep.subr.mxu0 0.0
    %437 = vmatpush2.msra.mxu0 %v150
    %438 = vmatprep.subr.mxu0 0.0
    %439 = vmatpush2.msra.mxu0 %v149
    %440 = vmatprep.subr.mxu0 0.0
    %441 = vmatpush2.msra.mxu0 %v148
    %442 = vmatprep.subr.mxu0 0.0
    %443 = vmatpush2.msra.mxu0 %v147
    %444 = vmatprep.mubr.f32.mxu0 %v34
    %445 = vmatmul.mubr.f32.gmra.mxu0 %v33
    %v446 = vpop.f32.mrf.mxu0
    %v447 = vadd.f32 %v377, %v446
    %v448 = vpop.f32.mrf.mxu0
    %449 = vdwg.mxu0
    %v450 = vld [vmem:[%s3] sm:$0xff]
    %v451 = vld [vmem:[%s3 + $0x8] sm:$0xff]
    %v452 = vld [vmem:[%s3 + $0x10] sm:$0xff]
    %v453 = vld [vmem:[%s3 + $0x18] sm:$0xff]
    %v454 = vld [vmem:[%s4] sm:$0x1]
    %v456 = vlaneseq
    %v457 = vshrl.u32 %v456, 7
    %v458 = vsub.s32 0, %v457
    %v459 = vrot.slane %v454, %v458
    %vm461 = vcmask 261120
    %v463 = vsel %vm461, %v447, 0
    %465 = vmatprep.subr.mxu0 0.0
    %466 = vmatpush1.msra.mxu0 0.0
    %467 = vmatprep.subr.mxu0 0.0
    %468 = vmatpush1.msra.mxu0 0.0
    %469 = vmatprep.subr.mxu0 0.0
    %470 = vmatpush1.msra.mxu0 0.0
    %471 = vmatprep.subr.mxu0 0.0
    %472 = vmatpush1.msra.mxu0 0.0
    %473 = vmatprep.subr.mxu0 0.0
    %474 = vmatpush1.msra.mxu0 0.0
    %475 = vmatprep.subr.mxu0 0.0
    %476 = vmatpush1.msra.mxu0 0.0
    %477 = vmatprep.subr.mxu0 0.0
    %478 = vmatpush1.msra.mxu0 0.0
    %479 = vmatprep.subr.mxu0 0.0
    %480 = vmatpush1.msra.mxu0 0.0
    %481 = vmatprep.subr.mxu0 0.0
    %482 = vmatpush1.msra.mxu0 0.0
    %483 = vmatprep.subr.mxu0 0.0
    %484 = vmatpush1.msra.mxu0 0.0
    %485 = vmatprep.subr.mxu0 0.0
    %486 = vmatpush1.msra.mxu0 0.0
    %487 = vmatprep.subr.mxu0 0.0
    %488 = vmatpush1.msra.mxu0 0.0
    %489 = vmatprep.subr.mxu0 0.0
    %490 = vmatpush1.msra.mxu0 %v453
    %491 = vmatprep.subr.mxu0 0.0
    %492 = vmatpush1.msra.mxu0 %v452
    %493 = vmatprep.subr.mxu0 0.0
    %494 = vmatpush1.msra.mxu0 %v451
    %495 = vmatprep.subr.mxu0 0.0
    %496 = vmatpush1.msra.mxu0 %v450
    %497 = vmatprep.subr.mxu0 0.0
    %498 = vmatpush2.msra.mxu0 0.0
    %499 = vmatprep.subr.mxu0 0.0
    %500 = vmatpush2.msra.mxu0 0.0
    %501 = vmatprep.subr.mxu0 0.0
    %502 = vmatpush2.msra.mxu0 0.0
    %503 = vmatprep.subr.mxu0 0.0
    %504 = vmatpush2.msra.mxu0 0.0
    %505 = vmatprep.subr.mxu0 0.0
    %506 = vmatpush2.msra.mxu0 0.0
    %507 = vmatprep.subr.mxu0 0.0
    %508 = vmatpush2.msra.mxu0 0.0
    %509 = vmatprep.subr.mxu0 0.0
    %510 = vmatpush2.msra.mxu0 0.0
    %511 = vmatprep.subr.mxu0 0.0
    %512 = vmatpush2.msra.mxu0 0.0
    %513 = vmatprep.subr.mxu0 0.0
    %514 = vmatpush2.msra.mxu0 0.0
    %515 = vmatprep.subr.mxu0 0.0
    %516 = vmatpush2.msra.mxu0 0.0
    %517 = vmatprep.subr.mxu0 0.0
    %518 = vmatpush2.msra.mxu0 0.0
    %519 = vmatprep.subr.mxu0 0.0
    %520 = vmatpush2.msra.mxu0 0.0
    %521 = vmatprep.subr.mxu0 0.0
    %522 = vmatpush2.msra.mxu0 0.0
    %523 = vmatprep.subr.mxu0 0.0
    %524 = vmatpush2.msra.mxu0 0.0
    %525 = vmatprep.subr.mxu0 0.0
    %526 = vmatpush2.msra.mxu0 0.0
    %527 = vmatprep.subr.mxu0 0.0
    %528 = vmatpush2.msra.mxu0 0.0
    %529 = vmatprep.mubr.f32.mxu0 0.0
    %530 = vmatmul.mubr.f32.gmra.mxu0 %v463
    %v531 = vpop.f32.mrf.mxu0
    %v532 = vadd.f32 %v459, %v531
    %v533 = vpop.f32.mrf.mxu0
    %534 = vdwg.mxu0
    %v535 = vmax.f32 %v532, 0.0
    %v536 = vld [vmem:[%s5] sm:$0xff]
    %v537 = vld [vmem:[%s5 + $0x8] sm:$0xff]
    %v538 = vld [vmem:[%s5 + $0x10] sm:$0xff]
    %v539 = vld [vmem:[%s5 + $0x18] sm:$0xff]
    %v540 = vld [vmem:[%s6] sm:$0x1]
    %v542 = vlaneseq
    %v543 = vshrl.u32 %v542, 7
    %v544 = vsub.s32 0, %v543
    %v545 = vrot.slane %v540, %v544
    %v548 = vsel %vm461, %v535, 0
    %550 = vmatprep.subr.mxu0 0.0
    %551 = vmatpush1.msra.mxu0 0.0
    %552 = vmatprep.subr.mxu0 0.0
    %553 = vmatpush1.msra.mxu0 0.0
    %554 = vmatprep.subr.mxu0 0.0
    %555 = vmatpush1.msra.mxu0 0.0
    %556 = vmatprep.subr.mxu0 0.0
    %557 = vmatpush1.msra.mxu0 0.0
    %558 = vmatprep.subr.mxu0 0.0
    %559 = vmatpush1.msra.mxu0 0.0
    %560 = vmatprep.subr.mxu0 0.0
    %561 = vmatpush1.msra.mxu0 0.0
    %562 = vmatprep.subr.mxu0 0.0
    %563 = vmatpush1.msra.mxu0 0.0
    %564 = vmatprep.subr.mxu0 0.0
    %565 = vmatpush1.msra.mxu0 0.0
    %566 = vmatprep.subr.mxu0 0.0
    %567 = vmatpush1.msra.mxu0 0.0
    %568 = vmatprep.subr.mxu0 0.0
    %569 = vmatpush1.msra.mxu0 0.0
    %570 = vmatprep.subr.mxu0 0.0
    %571 = vmatpush1.msra.mxu0 0.0
    %572 = vmatprep.subr.mxu0 0.0
    %573 = vmatpush1.msra.mxu0 0.0
    %574 = vmatprep.subr.mxu0 0.0
    %575 = vmatpush1.msra.mxu0 %v539
    %576 = vmatprep.subr.mxu0 0.0
    %577 = vmatpush1.msra.mxu0 %v538
    %578 = vmatprep.subr.mxu0 0.0
    %579 = vmatpush1.msra.mxu0 %v537
    %580 = vmatprep.subr.mxu0 0.0
    %581 = vmatpush1.msra.mxu0 %v536
    %582 = vmatprep.subr.mxu0 0.0
    %583 = vmatpush2.msra.mxu0 0.0
    %584 = vmatprep.subr.mxu0 0.0
    %585 = vmatpush2.msra.mxu0 0.0
    %586 = vmatprep.subr.mxu0 0.0
    %587 = vmatpush2.msra.mxu0 0.0
    %588 = vmatprep.subr.mxu0 0.0
    %589 = vmatpush2.msra.mxu0 0.0
    %590 = vmatprep.subr.mxu0 0.0
    %591 = vmatpush2.msra.mxu0 0.0
    %592 = vmatprep.subr.mxu0 0.0
    %593 = vmatpush2.msra.mxu0 0.0
    %594 = vmatprep.subr.mxu0 0.0
    %595 = vmatpush2.msra.mxu0 0.0
    %596 = vmatprep.subr.mxu0 0.0
    %597 = vmatpush2.msra.mxu0 0.0
    %598 = vmatprep.subr.mxu0 0.0
    %599 = vmatpush2.msra.mxu0 0.0
    %600 = vmatprep.subr.mxu0 0.0
    %601 = vmatpush2.msra.mxu0 0.0
    %602 = vmatprep.subr.mxu0 0.0
    %603 = vmatpush2.msra.mxu0 0.0
    %604 = vmatprep.subr.mxu0 0.0
    %605 = vmatpush2.msra.mxu0 0.0
    %606 = vmatprep.subr.mxu0 0.0
    %607 = vmatpush2.msra.mxu0 0.0
    %608 = vmatprep.subr.mxu0 0.0
    %609 = vmatpush2.msra.mxu0 0.0
    %610 = vmatprep.subr.mxu0 0.0
    %611 = vmatpush2.msra.mxu0 0.0
    %612 = vmatprep.subr.mxu0 0.0
    %613 = vmatpush2.msra.mxu0 0.0
    %614 = vmatprep.mubr.f32.mxu0 0.0
    %615 = vmatmul.mubr.f32.gmra.mxu0 %v548
    %v616 = vpop.f32.mrf.mxu0
    %v617 = vadd.f32 %v545, %v616
    %v618 = vpop.f32.mrf.mxu0
    %619 = vdwg.mxu0
    %vm620 = vcmask 64512
    %v621 = vsel %vm620, %v617, -inf
    %622 = vmax.xlane.f32.xlu0 %v621
    %v623 = vpop.xlane.xlu0 %622
    %v624 = vsub.f32 %v617, %v623
    %v625 = vmul.f32 %v624, 1.442695
    %v626 = vpow.pop %v625
    %v627 = vsel %vm620, %v626, 0.0
    %628 = vadd.xlane.f32.xlu0 %v627
    %v629 = vpop.xlane.xlu0 %628
    %v630 = vrcp.pop %v629
    %v631 = vmul.f32 %v626, %v630
    %632 = vrot.lane.b32.xlu0 %v535, 32
    %v633 = vpop.permute.xlu0 %632
    %636 = vrot.lane.b32.xlu0 %v617, 64
    %v637 = vpop.permute.xlu0 %636
    %640 = vrot.lane.b32.xlu0 %v631, 72
    %v641 = vpop.permute.xlu0 %640
    %v643 = vsel %vm461, %v447, %v633
    %vm644 = vcmask 523264
    %v645 = vsel %vm644, %v643, %v637
    %vm646 = vcmask 588800
    %v647 = vsel %vm646, %v645, %v641
    %vm648 = vcmask 654336
    %v649 = vsel %vm648, %v647, 0.0
    %650 = vst [vmem:[#allocation2] sm:$0xff] %v649
    // Predicated region
    $region30: #{tpu_custom_call.1} parent=1 // pred_check
      _
    $region31: #{tpu_custom_call.1} parent=1 // pred_check_branch
      %652 = sbr.rel (0) target = $region33
    $region32: #{tpu_custom_call.1} parent=1 // pred_region
      %s654 = ssub.s32 128, 128
      %655 = vsyncadd [#allocation3], %s654
      %s657 = sshll.u32 [#allocation2], 4
      %s658 = int_to_ptr.vmem [resolvable:$true] %s657
      %660 = dma.vmem_to_hbm [thread:$0]  %s658, 128, %s7, [#allocation3]
    $region33: #{tpu_custom_call.1} parent=1 // pred_fallthru
      _
    // Predicated region
    $region34: #{tpu_custom_call.1} parent=1 // pred_check
      _
    $region35: #{tpu_custom_call.1} parent=1 // pred_check_branch
      %662 = sbr.rel (0) target = $region37
    $region36: #{tpu_custom_call.1} parent=1 // pred_region
      %663 = dma.done [#allocation3], 128
    $region37: #{tpu_custom_call.1} parent=1 // pred_fallthru
      _
    %664 = vsyncpa [#allocation3], 1

</llo_original>
